<compile_context>
chip_gen: v7x
topology: tpu7x:2x2x1
jax: 0.10.0
libtpu: 0.0.40
codegen_flags: <defaults>
</compile_context>

<pallas_src>
import functools

import jax
import jax.numpy as jnp
from jax.experimental import pallas as pl
from jax.experimental.pallas import tpu as pltpu

# VMEM planning constants (bytes).
_X_BLOCK_TARGET_BYTES = 4 * 1024 * 1024   # 2-8 MiB x-slab sweet spot (>=85% HBM roofline)
_VMEM_BLOCK_BUDGET = 28 * 1024 * 1024     # explicit per-step working-set cap
_VMEM_LIMIT_BYTES = 40 * 1024 * 1024      # > v5e 16 MiB scoped default, < v7x 64 MiB physical


def _attlayer2_kernel(x_ref, w_ref, b_ref, q_ref, o_ref, *, true_s, compute_dtype):
    tb, s_pad, d = x_ref.shape      # static block shape
    x = x_ref[...]                  # (tb, S_pad, D) f32
    w = w_ref[...]                  # (D, A_pad)     f32
    bias = b_ref[...]               # (1, A_pad)     f32
    q = q_ref[...]                  # (1, A_pad)     f32

    # ---- projection: one (tb*S_pad, D) @ (D, A_pad) MXU matmul ---------------
    # S_pad is a multiple of 8 (wrapper pads), so this reshape is a pure view.
    # Operands cast to compute_dtype (bf16 default) with f32 accumulation.
    x2 = x.reshape(tb * s_pad, d)
    pre = jnp.dot(x2.astype(compute_dtype), w.astype(compute_dtype),
                  preferred_element_type=jnp.float32) + bias        # (tb*S_pad, A_pad) f32

    # tanh in compute_dtype: EUP is the saturated unit in the small-D regime and
    # its bf16 path runs ~2x the f32 rate on v6e/v7x.
    proj = jnp.tanh(pre.astype(compute_dtype))                      # (tb*S_pad, A_pad)

    # ---- attention scores: VPU broadcast-mul + lane reduce (MXU stays free) --
    scores = jnp.sum(proj * q, axis=-1, keepdims=True)              # (tb*S_pad, 1) f32
    scores = scores.reshape(tb, s_pad, 1)                           # free: S_pad % 8 == 0

    # Mask zero-padded sequence positions out of the softmax (only emitted when
    # the wrapper actually padded S).
    if true_s != s_pad:
        seq = jax.lax.broadcasted_iota(jnp.int32, (tb, s_pad, 1), 1)
        scores = jnp.where(seq < true_s, scores, -1e30)

    # ---- softmax over the sequence axis (f32, max-subtracted) ----------------
    m = jnp.max(scores, axis=1, keepdims=True)                      # (tb, 1, 1)
    e = jnp.exp(scores - m)                                         # (tb, S_pad, 1)
    denom = jnp.sum(e, axis=1, keepdims=True)                       # (tb, 1, 1)

    # ---- weighted sum over seq; fold 1/denom into the (tb, D) result ---------
    ctx = jnp.sum(x * e, axis=1)                                    # (tb, D) f32
    inv = pl.reciprocal(denom[:, 0, :], approx=False)               # (tb, 1)
    o_ref[...] = (ctx * inv).astype(o_ref.dtype)


def _pick_block_batch(B, s_pad, d, a_pad):
    """Batch-block size chosen by VMEM bytes (not row count)."""
    # Dominant per-batch-element VMEM consumers (f32 bytes, conservative):
    #   x block (double-buffered) + x*e temp : 3 * S_pad * D
    #   proj / exp intermediates             : 3 * S_pad * A_pad
    #   output block (double-buffered)       : 2 * D
    per_b = 4 * (3 * s_pad * d + 3 * s_pad * a_pad + 2 * d)
    param_bytes = 8 * (d * a_pad + 2 * a_pad)          # W, b, q (double-buffered)
    tb_vmem = max(1, (_VMEM_BLOCK_BUDGET - param_bytes) // per_b)
    tb_hbm = max(1, _X_BLOCK_TARGET_BYTES // (4 * s_pad * d))
    tb = int(min(tb_vmem, tb_hbm, B))
    if B > 8:
        # Keep >= 2 grid steps so both v7x TensorCores get work and the
        # BlockSpec pipeline has something to overlap.
        tb = min(tb, -(-B // 2))
    # Multiple of 8: sublane-dense output store and satisfies the (8, 128)
    # block-shape rule for the (tb, D) output; the wrapper pads B up to tb.
    tb = max(8, (tb // 8) * 8)
    return tb
    # TODO(synk): for very long S where even tb=1 exceeds the VMEM budget, add a
    # second 'arbitrary' grid axis over S with an online-softmax accumulator.


def att_layer2(inputs, w, b, q, *, block_batch=None, compute_dtype=jnp.bfloat16):
    """inputs: (B, S, D) f32; w: (D, A); b: (1, A); q: (1, A) -> (B, D)."""
    B, S, D = inputs.shape
    A = w.shape[1]

    # Pad the attention dim to a 128-lane multiple (e.g. 200 -> 256).
    # Padded columns: tanh(0 + 0) * q_pad(=0) contributes exactly zero.
    A_pad = -(-A // 128) * 128
    if A_pad != A:
        pad = A_pad - A
        w = jnp.pad(w, ((0, 0), (0, pad)))
        b = jnp.pad(b, ((0, 0), (0, pad)))
        q = jnp.pad(q, ((0, 0), (0, pad)))

    # Pad S to a multiple of 8 so the in-kernel reshape is layout-free; the
    # padded (zero) rows are masked out of the softmax inside the kernel.
    S_pad = -(-S // 8) * 8
    x = inputs
    if S_pad != S:
        x = jnp.pad(x, ((0, 0), (0, S_pad - S), (0, 0)))

    tb = _pick_block_batch(B, S_pad, D, A_pad) if block_batch is None else block_batch
    grid_b = -(-B // tb)
    B_pad = grid_b * tb
    if B_pad != B:
        # Zero-padded batch rows produce a harmless uniform softmax and are
        # sliced off below.
        x = jnp.pad(x, ((0, B_pad - B), (0, 0), (0, 0)))

    kernel = functools.partial(_attlayer2_kernel, true_s=S, compute_dtype=compute_dtype)

    cost = pl.CostEstimate(
        flops=2 * B_pad * S_pad * D * A_pad + 4 * B_pad * S_pad * A_pad + 2 * B_pad * S_pad * D,
        transcendentals=B_pad * S_pad * A_pad + B_pad * S_pad,
        bytes_accessed=4 * (B_pad * S_pad * D + D * A_pad + 2 * A_pad + B_pad * D),
    )

    out = pl.pallas_call(
        kernel,
        out_shape=jax.ShapeDtypeStruct((B_pad, D), inputs.dtype),
        grid_spec=pltpu.PrefetchScalarGridSpec(
            num_scalar_prefetch=0,
            grid=(grid_b,),
            in_specs=[
                pl.BlockSpec((tb, S_pad, D), lambda i: (i, 0, 0)),   # streamed x slab
                pl.BlockSpec((D, A_pad), lambda i: (0, 0)),          # W (resident)
                pl.BlockSpec((1, A_pad), lambda i: (0, 0)),          # bias (resident)
                pl.BlockSpec((1, A_pad), lambda i: (0, 0)),          # query (resident)
            ],
            out_specs=pl.BlockSpec((tb, D), lambda i: (i, 0)),       # dense (tb, D) store
        ),
        compiler_params=pltpu.CompilerParams(
            dimension_semantics=("parallel",),
            vmem_limit_bytes=_VMEM_LIMIT_BYTES,
        ),
        cost_estimate=cost,
    )(x, w, b, q)

    return out[:B] if B_pad != B else out


def att_layer2_ref(inputs, w, b, q):
    """Pure-JAX reference matching the PyTorch forward exactly."""
    proj = jnp.tanh(jnp.einsum("bsd,da->bsa", inputs, w) + b)    # (B, S, A)
    scores = jnp.einsum("bsa,a->bs", proj, q[0])                 # (B, S)
    weights = jax.nn.softmax(scores, axis=1)[..., None]          # (B, S, 1)
    return jnp.sum(inputs * weights, axis=1)                     # (B, D)


if __name__ == "__main__":
    key = jax.random.PRNGKey(0)
    k_x1, k_x2, k_w, k_b, k_q = jax.random.split(key, 5)

    # Shapes consistent with the module: input_dim=32, attention_dim=200 (torch
    # default; padded to 256 lanes by the wrapper); small batch/seq.
    D, A = 32, 200
    bound_w = 1.0 / (D ** 0.5)
    bound_q = 1.0 / (A ** 0.5)
    w = jax.random.uniform(k_w, (D, A), jnp.float32, -bound_w, bound_w)
    b = jax.random.uniform(k_b, (1, A), jnp.float32, -bound_w, bound_w)
    q = jax.random.uniform(k_q, (1, A), jnp.float32, -bound_q, bound_q)

    # 1) Default bf16-compute path; B=16 -> two grid steps (megacore-friendly).
    B1, S1 = 16, 8
    x1 = jax.random.normal(k_x1, (B1, S1, D), dtype=jnp.float32)
    out1 = jax.block_until_ready(att_layer2(x1, w, b, q))
    ref1 = att_layer2_ref(x1, w, b, q)
    assert out1.shape == (B1, D)
    assert jnp.allclose(out1, ref1, atol=2e-2, rtol=2e-2), "bf16 path mismatch vs reference"

    # 2) Pure-f32 compute path with ragged shapes: exercises the seq padding +
    #    softmax mask and the batch padding / output slice.
    B2, S2 = 11, 7
    x2 = jax.random.normal(k_x2, (B2, S2, D), dtype=jnp.float32)
    out2 = jax.block_until_ready(att_layer2(x2, w, b, q, compute_dtype=jnp.float32))
    ref2 = att_layer2_ref(x2, w, b, q)
    assert out2.shape == (B2, D)
    assert jnp.allclose(out2, ref2, atol=1e-4, rtol=1e-4), "f32 path mismatch vs reference"

    print("KERNEL_OK")
</pallas_src>

<mosaic_0001>
module attributes {stable_mosaic.version = 11 : i64} {
  func.func @_attlayer2_kernel(%arg0: i32, %arg1: memref<8x8x32xf32, #tpu.memory_space<vmem>>, %arg2: memref<32x256xf32, #tpu.memory_space<vmem>>, %arg3: memref<1x256xf32, #tpu.memory_space<vmem>>, %arg4: memref<1x256xf32, #tpu.memory_space<vmem>>, %arg5: memref<8x32xf32, #tpu.memory_space<vmem>>) attributes {dimension_semantics = [#tpu.dimension_semantics<parallel>], iteration_bounds = array<i64: 2>, scalar_prefetch = 0 : i64, scratch_operands = 0 : i64, tpu.core_type = #tpu.core_type<tc>, window_params = [{transform_indices = @transform_0, window_bounds = array<i64: 8, 8, 32>}, {pipeline_mode = #tpu.pipeline_mode<synchronous>, transform_indices = @transform_1, window_bounds = array<i64: 32, 256>}, {pipeline_mode = #tpu.pipeline_mode<synchronous>, transform_indices = @transform_2, window_bounds = array<i64: 1, 256>}, {pipeline_mode = #tpu.pipeline_mode<synchronous>, transform_indices = @transform_3, window_bounds = array<i64: 1, 256>}, {transform_indices = @transform_4, window_bounds = array<i64: 8, 32>}]} {
    %c0 = arith.constant 0 : index
    %c0_0 = arith.constant 0 : index
    %c0_1 = arith.constant 0 : index
    %0 = vector.load %arg1[%c0, %c0_0, %c0_1] : memref<8x8x32xf32, #tpu.memory_space<vmem>>, vector<8x8x32xf32>
    %c0_2 = arith.constant 0 : index
    %c0_3 = arith.constant 0 : index
    %1 = vector.load %arg2[%c0_2, %c0_3] : memref<32x256xf32, #tpu.memory_space<vmem>>, vector<32x256xf32>
    %c0_4 = arith.constant 0 : index
    %c0_5 = arith.constant 0 : index
    %2 = vector.load %arg3[%c0_4, %c0_5] : memref<1x256xf32, #tpu.memory_space<vmem>>, vector<1x256xf32>
    %c0_6 = arith.constant 0 : index
    %c0_7 = arith.constant 0 : index
    %3 = vector.load %arg4[%c0_6, %c0_7] : memref<1x256xf32, #tpu.memory_space<vmem>>, vector<1x256xf32>
    %4 = vector.shape_cast %0 : vector<8x8x32xf32> to vector<64x32xf32>
    %5 = arith.truncf %4 : vector<64x32xf32> to vector<64x32xbf16>
    %6 = arith.truncf %1 : vector<32x256xf32> to vector<32x256xbf16>
    %cst = arith.constant dense<0.000000e+00> : vector<64x256xf32>
    %7 = tpu.matmul %5, %6, %cst {dimension_numbers = #tpu.dot_dimension_numbers<[1], [0], [0], [1], [0, 0, 1, 1], [], []>} : vector<64x32xbf16>, vector<32x256xbf16>, vector<64x256xf32> -> vector<64x256xf32>
    %8 = vector.broadcast %2 : vector<1x256xf32> to vector<64x256xf32>
    %9 = arith.addf %7, %8 : vector<64x256xf32>
    %10 = arith.truncf %9 : vector<64x256xf32> to vector<64x256xbf16>
    %11 = math.tanh %10 : vector<64x256xbf16>
    %12 = arith.extf %11 : vector<64x256xbf16> to vector<64x256xf32>
    %13 = vector.broadcast %3 : vector<1x256xf32> to vector<64x256xf32>
    %14 = arith.mulf %12, %13 : vector<64x256xf32>
    %cst_8 = arith.constant dense<0.000000e+00> : vector<64xf32>
    %15 = vector.multi_reduction <add>, %14, %cst_8 [1] : vector<64x256xf32> to vector<64xf32>
    %16 = vector.shape_cast %15 : vector<64xf32> to vector<64x1xf32>
    %17 = vector.shape_cast %16 : vector<64x1xf32> to vector<8x8x1xf32>
    %cst_9 = arith.constant dense<0xFF800000> : vector<8x1xf32>
    %18 = vector.multi_reduction <maximumf>, %17, %cst_9 [1] : vector<8x8x1xf32> to vector<8x1xf32>
    %19 = vector.shape_cast %18 : vector<8x1xf32> to vector<8x1x1xf32>
    %20 = vector.broadcast %19 : vector<8x1x1xf32> to vector<8x8x1xf32>
    %21 = arith.subf %17, %20 : vector<8x8x1xf32>
    %22 = math.exp %21 : vector<8x8x1xf32>
    %cst_10 = arith.constant dense<0.000000e+00> : vector<8x1xf32>
    %23 = vector.multi_reduction <add>, %22, %cst_10 [1] : vector<8x8x1xf32> to vector<8x1xf32>
    %24 = vector.shape_cast %23 : vector<8x1xf32> to vector<8x1x1xf32>
    %25 = vector.broadcast %22 : vector<8x8x1xf32> to vector<8x8x32xf32>
    %26 = arith.mulf %0, %25 : vector<8x8x32xf32>
    %cst_11 = arith.constant dense<0.000000e+00> : vector<8x32xf32>
    %27 = vector.multi_reduction <add>, %26, %cst_11 [1] : vector<8x8x32xf32> to vector<8x32xf32>
    %28 = vector.shape_cast %24 : vector<8x1x1xf32> to vector<8x1xf32>
    %29 = tpu.reciprocal %28 : vector<8x1xf32> -> vector<8x1xf32>
    %30 = vector.broadcast %29 : vector<8x1xf32> to vector<8x32xf32>
    %31 = arith.mulf %27, %30 : vector<8x32xf32>
    %c0_12 = arith.constant 0 : index
    %c0_13 = arith.constant 0 : index
    %32 = vector.load %arg5[%c0_12, %c0_13] : memref<8x32xf32, #tpu.memory_space<vmem>>, vector<8x32xf32>
    tpu.vector_store %arg5[%c0_12, %c0_13], %31 {strides = array<i32>} : memref<8x32xf32, #tpu.memory_space<vmem>>, vector<8x32xf32>,
    return
  }
  func.func @transform_0(%arg0: i32) -> (i32, i32, i32) {
    %c0_i32 = arith.constant 0 : i32
    %c0_i32_0 = arith.constant 0 : i32
    %c0_i32_1 = arith.constant 0 : i32
    return %arg0, %c0_i32, %c0_i32_0 : i32, i32, i32
  }
  func.func @transform_1(%arg0: i32) -> (i32, i32) {
    %c0_i32 = arith.constant 0 : i32
    %c0_i32_0 = arith.constant 0 : i32
    %c0_i32_1 = arith.constant 0 : i32
    return %c0_i32, %c0_i32_0 : i32, i32
  }
  func.func @transform_2(%arg0: i32) -> (i32, i32) {
    %c0_i32 = arith.constant 0 : i32
    %c0_i32_0 = arith.constant 0 : i32
    %c0_i32_1 = arith.constant 0 : i32
    return %c0_i32, %c0_i32_0 : i32, i32
  }
  func.func @transform_3(%arg0: i32) -> (i32, i32) {
    %c0_i32 = arith.constant 0 : i32
    %c0_i32_0 = arith.constant 0 : i32
    %c0_i32_1 = arith.constant 0 : i32
    return %c0_i32, %c0_i32_0 : i32, i32
  }
  func.func @transform_4(%arg0: i32) -> (i32, i32) {
    %c0_i32 = arith.constant 0 : i32
    %c0_i32_0 = arith.constant 0 : i32
    return %arg0, %c0_i32 : i32, i32
  }
}

</mosaic_0001>

<llo_original>
// kernel: tpu_custom_call.1
$region0: #{tpu_custom_call.1}
  #allocation0 [shape = 'u32[]', space=smem, size = 0x4, offset = 0x4, fixed_abs, tag = 'smem constant byte address 0x4 - core index']
  #allocation1 [shape = 'u32[144,128]{1,0:T(1,128)}', space=vmem, size = 0x12000, scoped, tag = 'internal scratch']
  %s0 = inlined_call_operand.hbm [shape: f32[16,8,32], index: 0, kind: input, shape index: {}]
  %s1 = inlined_call_operand.hbm [shape: f32[32,256], index: 1, kind: input, shape index: {}]
  %s2 = inlined_call_operand.vmem [shape: f32[1,256], index: 2, kind: input, shape index: {}]
  %s3 = inlined_call_operand.vmem [shape: f32[1,256], index: 3, kind: input, shape index: {}]
  %s4 = inlined_call_operand.hbm [shape: f32[16,32], index: 4, kind: output, shape index: {}]
  %s5 = sld [smem:[#allocation0]]
  $region57: #{tpu_custom_call.1} parent=0
    _
  %s7 = ssub.s32 1, %s5
  %s8 = scalar_select 0, %s7, %s5
  $region1: #{tpu_custom_call.1} parent=0
    #allocation2 [shape = 'u8[65536]{0}', space=vmem, size = 0x10000, scoped, tag = 'input window, operand 0']
    #allocation3 [shape = 's32[2]{0}', space=sflag, size = 0x8, scoped, tag = 'scoped memory for tpu_custom_call.1']
    #allocation4 [shape = 's32[2]{0}', space=sflag, size = 0x8, scoped, tag = 'scoped memory for tpu_custom_call.1']
    #allocation5 [shape = 'u8[32768]{0}', space=vmem, size = 0x8000, scoped, tag = 'input window, operand 1, single buffered']
    #allocation6 [shape = 's32[1]{0}', space=sflag, size = 0x4, scoped, tag = 'scoped memory for tpu_custom_call.1']
    #allocation7 [shape = 'u8[8192]{0}', space=vmem, size = 0x2000, scoped, tag = 'output window, operand 0']
    %9 = vsyncpa [#allocation3], 0
    %s10 = scalar_lea.sflag [#allocation3], 1
    %11 = vsyncpa %s10, 0
    %12 = vsyncpa [#allocation6], 0
    %13 = vsyncpa [#allocation4], 0
    %s14 = scalar_lea.sflag [#allocation4], 1
    %15 = vsyncpa %s14, 0
    loop: start=0, step=1, limit=4
    $region2: #{tpu_custom_call.1} parent=1 // loop_pre_header
      _
    $region3: #{tpu_custom_call.1} parent=1 // loop_header
      %s17 = sphi 0, %s21
      %p18 = scmp.ge.s32.totalorder %s17, 4
      %s27 = sphi 0, %s29
      %s30 = sphi 0, %s27
      %s31 = sphi 0, %s30
      %s47 = sphi 0, %s31
      %s51 = sphi 0, %s51
      %s53 = sphi 0, %s51
      %s54 = sphi 0, %s53
      %s68 = sphi 0, %s54
      %s72 = sphi 0, %s72
      %s74 = sphi 0, %s72
      %s75 = sphi 0, %s74
      %s89 = sphi 0, %s75
      %s93 = sphi 0, %s93
      %s95 = sphi 0, %s93
      %s96 = sphi 0, %s95
      %s110 = sphi 0, %s96
      %s116 = sphi 0, %s118
      %s119 = sphi 0, %s116
      %s120 = sphi 0, %s119
      %s136 = sphi 0, %s120
    $region4: #{tpu_custom_call.1} parent=1 // loop_header_branch
      %20 = sbr.rel (%p18) target = $region8
    $region5: #{tpu_custom_call.1} parent=1 // loop_body
      %s22 = ssub.s32 %s17, 1
      %s23 = ssub.s32 %s17, 2
      %s24 = sadd.s32 %s17, 1
      %s25 = ssub.s32 %s17, %s24
      %p26 = scmp.eq.s32.totalorder %s25, 0
      %s28 = sadd.s32 %s27, 1
      %s29 = scalar_select %p26, %s27, %s28
      %p32 = pneg %p26
      %p33 = scmp.eq.s32.totalorder %s17, 1
      %p34 = por %p32, %p33
      %p35 = scmp.ne.s32.totalorder %s27, %s30
      %p36 = scmp.eq.s32.totalorder %s17, 0
      %p37 = por %p35, %p36
      %p38 = scmp.ne.s32.totalorder %s27, %s30
      %p39 = scmp.eq.s32.totalorder %s22, 1
      %p40 = por %p38, %p39
      %p41 = scmp.ne.s32.totalorder %s30, %s31
      %p42 = scmp.eq.s32.totalorder %s22, 0
      %p43 = por %p41, %p42
      %p44 = scmp.ne.s32.totalorder %s30, %s31
      %p45 = scmp.eq.s32.totalorder %s23, 1
      %p46 = por %p44, %p45
      %p48 = scmp.ne.s32.totalorder %s31, %s47
      %p49 = scmp.eq.s32.totalorder %s23, 0
      %p50 = por %p48, %p49
      %s52 = sadd.s32 %s51, 1
      %p55 = scmp.eq.s32.totalorder %s17, 1
      %p56 = scmp.ne.s32.totalorder %s51, %s53
      %p57 = scmp.eq.s32.totalorder %s17, 0
      %p58 = por %p56, %p57
      %p59 = scmp.ne.s32.totalorder %s51, %s53
      %p60 = scmp.eq.s32.totalorder %s22, 1
      %p61 = por %p59, %p60
      %p62 = scmp.ne.s32.totalorder %s53, %s54
      %p63 = scmp.eq.s32.totalorder %s22, 0
      %p64 = por %p62, %p63
      %p65 = scmp.ne.s32.totalorder %s53, %s54
      %p66 = scmp.eq.s32.totalorder %s23, 1
      %p67 = por %p65, %p66
      %p69 = scmp.ne.s32.totalorder %s54, %s68
      %p70 = scmp.eq.s32.totalorder %s23, 0
      %p71 = por %p69, %p70
      %s73 = sadd.s32 %s72, 1
      %p76 = scmp.eq.s32.totalorder %s17, 1
      %p77 = scmp.ne.s32.totalorder %s72, %s74
      %p78 = scmp.eq.s32.totalorder %s17, 0
      %p79 = por %p77, %p78
      %p80 = scmp.ne.s32.totalorder %s72, %s74
      %p81 = scmp.eq.s32.totalorder %s22, 1
      %p82 = por %p80, %p81
      %p83 = scmp.ne.s32.totalorder %s74, %s75
      %p84 = scmp.eq.s32.totalorder %s22, 0
      %p85 = por %p83, %p84
      %p86 = scmp.ne.s32.totalorder %s74, %s75
      %p87 = scmp.eq.s32.totalorder %s23, 1
      %p88 = por %p86, %p87
      %p90 = scmp.ne.s32.totalorder %s75, %s89
      %p91 = scmp.eq.s32.totalorder %s23, 0
      %p92 = por %p90, %p91
      %s94 = sadd.s32 %s93, 1
      %p97 = scmp.eq.s32.totalorder %s17, 1
      %p98 = scmp.ne.s32.totalorder %s93, %s95
      %p99 = scmp.eq.s32.totalorder %s17, 0
      %p100 = por %p98, %p99
      %p101 = scmp.ne.s32.totalorder %s93, %s95
      %p102 = scmp.eq.s32.totalorder %s22, 1
      %p103 = por %p101, %p102
      %p104 = scmp.ne.s32.totalorder %s95, %s96
      %p105 = scmp.eq.s32.totalorder %s22, 0
      %p106 = por %p104, %p105
      %p107 = scmp.ne.s32.totalorder %s95, %s96
      %p108 = scmp.eq.s32.totalorder %s23, 1
      %p109 = por %p107, %p108
      %p111 = scmp.ne.s32.totalorder %s96, %s110
      %p112 = scmp.eq.s32.totalorder %s23, 0
      %p113 = por %p111, %p112
      %s114 = ssub.s32 %s17, %s24
      %p115 = scmp.eq.s32.totalorder %s114, 0
      %s117 = sadd.s32 %s116, 1
      %s118 = scalar_select %p115, %s116, %s117
      %p121 = pneg %p115
      %p122 = scmp.eq.s32.totalorder %s17, 1
      %p123 = por %p121, %p122
      %p124 = scmp.ne.s32.totalorder %s116, %s119
      %p125 = scmp.eq.s32.totalorder %s17, 0
      %p126 = por %p124, %p125
      %p127 = scmp.ne.s32.totalorder %s116, %s119
      %p128 = scmp.eq.s32.totalorder %s22, 1
      %p129 = por %p127, %p128
      %p130 = scmp.ne.s32.totalorder %s119, %s120
      %p131 = scmp.eq.s32.totalorder %s22, 0
      %p132 = por %p130, %p131
      %p133 = scmp.ne.s32.totalorder %s119, %s120
      %p134 = scmp.eq.s32.totalorder %s23, 1
      %p135 = por %p133, %p134
      %p137 = scmp.ne.s32.totalorder %s120, %s136
      %p138 = scmp.eq.s32.totalorder %s23, 0
      %p139 = por %p137, %p138
      %p140 = scmp.le.s32.totalorder 1, %s17
      %p141 = scmp.lt.s32.totalorder %s17, 3
      %p142 = pnand %p140, %p141
      %p143 = pneg %p142
      // Predicated region
      $region9: #{tpu_custom_call.1} parent=5 // pred_check
        _
      $region10: #{tpu_custom_call.1} parent=5 // pred_check_branch
        %145 = sbr.rel (%p142) target = $region12
      $region11: #{tpu_custom_call.1} parent=5 // pred_region
        %s146 = ssub.s32 %s17, 1
        // Predicated region
        $region13: #{tpu_custom_call.1} parent=11 // pred_check
          %p147 = pneg %p64
        $region14: #{tpu_custom_call.1} parent=11 // pred_check_branch
          %149 = sbr.rel (%p147) target = $region16
        $region15: #{tpu_custom_call.1} parent=11 // pred_region
          %s151 = ssub.s32 1024, 1024
          %152 = vsyncadd [#allocation6], %s151
          %s153 = sshll.u32 [#allocation5], 4
          %s154 = int_to_ptr.vmem [resolvable:$true] %s153
          %159 = dma.hbm_to_vmem [thread:$0]  %s1, 1024, %s154, [#allocation6], 256, 256, 16
        $region16: #{tpu_custom_call.1} parent=11 // pred_fallthru
          _
        // Predicated region
        $region17: #{tpu_custom_call.1} parent=11 // pred_check
          %p160 = pneg %p85
        $region18: #{tpu_custom_call.1} parent=11 // pred_check_branch
          %162 = sbr.rel (%p160) target = $region20
        $region19: #{tpu_custom_call.1} parent=11 // pred_region
          _
        $region20: #{tpu_custom_call.1} parent=11 // pred_fallthru
          _
        // Predicated region
        $region21: #{tpu_custom_call.1} parent=11 // pred_check
          %p163 = pneg %p106
        $region22: #{tpu_custom_call.1} parent=11 // pred_check_branch
          %165 = sbr.rel (%p163) target = $region24
        $region23: #{tpu_custom_call.1} parent=11 // pred_region
          _
        $region24: #{tpu_custom_call.1} parent=11 // pred_fallthru
          _
      $region12: #{tpu_custom_call.1} parent=5 // pred_fallthru
        _
      %p166 = scmp.lt.s32.totalorder %s17, 2
      // Predicated region
      $region25: #{tpu_custom_call.1} parent=5 // pred_check
        %p167 = pneg %p166
      $region26: #{tpu_custom_call.1} parent=5 // pred_check_branch
        %169 = sbr.rel (%p167) target = $region28
      $region27: #{tpu_custom_call.1} parent=5 // pred_region
        // Predicated region
        $region29: #{tpu_custom_call.1} parent=27 // pred_check
          %p170 = pneg %p37
        $region30: #{tpu_custom_call.1} parent=27 // pred_check_branch
          %172 = sbr.rel (%p170) target = $region32
        $region31: #{tpu_custom_call.1} parent=27 // pred_region
          %s173 = sand.u32 %s27, 1
          %s174 = scalar_lea.sflag [#allocation3], %s173
          %s175 = sand.u32 %s27, 1
          %s176 = smul.addr %s175, 64
          %s177 = scalar_lea.vmem [#allocation2], %s176
          %s178 = smul.u32 8, %s17
          %s180 = ssub.s32 1024, 1024
          %181 = vsyncadd %s174, %s180
          %s182 = smul.addr %s178, 128
          %s183 = scalar_lea.hbm %s0, %s182
          %s184 = sshll.u32 %s177, 4
          %s185 = int_to_ptr.vmem [resolvable:$true] %s184
          %190 = dma.hbm_to_vmem [thread:$0]  %s183, 1024, %s185, %s174, 128, 128, 8
        $region32: #{tpu_custom_call.1} parent=27 // pred_fallthru
          _
      $region28: #{tpu_custom_call.1} parent=5 // pred_fallthru
        _
      %p191 = scmp.le.s32.totalorder 1, %s17
      %p192 = scmp.lt.s32.totalorder %s17, 3
      %p193 = pnand %p191, %p192
      %p194 = pneg %p193
      // Predicated region
      $region33: #{tpu_custom_call.1} parent=5 // pred_check
        _
      $region34: #{tpu_custom_call.1} parent=5 // pred_check_branch
        %196 = sbr.rel (%p193) target = $region36
      $region35: #{tpu_custom_call.1} parent=5 // pred_region
        %s197 = ssub.s32 %s17, 1
        %s198 = sand.u32 %s30, 1
        %s199 = scalar_lea.sflag [#allocation3], %s198
        %s200 = sand.u32 %s30, 1
        %s201 = smul.addr %s200, 64
        %s202 = scalar_lea.vmem [#allocation2], %s201
        // Predicated region
        $region37: #{tpu_custom_call.1} parent=35 // pred_check
          %p203 = pneg %p43
        $region38: #{tpu_custom_call.1} parent=35 // pred_check_branch
          %205 = sbr.rel (%p203) target = $region40
        $region39: #{tpu_custom_call.1} parent=35 // pred_region
          %206 = dma.done %s199, 1024
        $region40: #{tpu_custom_call.1} parent=35 // pred_fallthru
          _
        // Predicated region
        $region41: #{tpu_custom_call.1} parent=35 // pred_check
          %p207 = pneg %p64
        $region42: #{tpu_custom_call.1} parent=35 // pred_check_branch
          %209 = sbr.rel (%p207) target = $region44
        $region43: #{tpu_custom_call.1} parent=35 // pred_region
          %210 = dma.done [#allocation6], 1024
        $region44: #{tpu_custom_call.1} parent=35 // pred_fallthru
          _
        %s211 = sand.u32 %s30, 1
        %s212 = scalar_lea.sflag [#allocation3], %s211
        %s213 = sand.u32 %s30, 1
        %s214 = smul.addr %s213, 64
        %s215 = scalar_lea.vmem [#allocation2], %s214
        %p216 = pneg %p43
        %p217 = pneg %p40
        %p218 = pneg %p64
        %p219 = pneg %p61
        %p220 = pneg %p85
        %p221 = pneg %p82
        %p222 = pneg %p106
        %p223 = pneg %p103
        %p224 = pneg %p132
        %p225 = pneg %p129
        %s226 = sand.u32 %s119, 1
        %s227 = scalar_lea.sflag [#allocation4], %s226
        %s228 = sand.u32 %s119, 1
        %s229 = smul.addr %s228, 8
        %s230 = scalar_lea.vmem [#allocation7], %s229
        %s231 = smul.u32 8, %s22
        %v233 = vld [vmem:[%s202] sm:$0xff]
        %v234 = vld [vmem:[%s202 + $0x8] sm:$0xff]
        %v235 = vld [vmem:[%s202 + $0x10] sm:$0xff]
        %v236 = vld [vmem:[%s202 + $0x18] sm:$0xff]
        %v237 = vld [vmem:[%s202 + $0x20] sm:$0xff]
        %v238 = vld [vmem:[%s202 + $0x28] sm:$0xff]
        %v239 = vld [vmem:[%s202 + $0x30] sm:$0xff]
        %v240 = vld [vmem:[%s202 + $0x38] sm:$0xff]
        %v241 = vld [vmem:[#allocation5] sm:$0xff]
        %v242 = vld [vmem:[#allocation5 + $0x8] sm:$0xff]
        %v243 = vld [vmem:[#allocation5 + $0x10] sm:$0xff]
        %v244 = vld [vmem:[#allocation5 + $0x18] sm:$0xff]
        %v245 = vld [vmem:[#allocation5 + $0x20] sm:$0xff]
        %v246 = vld [vmem:[#allocation5 + $0x28] sm:$0xff]
        %v247 = vld [vmem:[#allocation5 + $0x30] sm:$0xff]
        %v248 = vld [vmem:[#allocation5 + $0x38] sm:$0xff]
        %v249 = vld [vmem:[%s2] sm:$0x3]
        %v250 = vld [vmem:[%s3] sm:$0x3]
        %v251 = vpack.c.bf16 %v234, %v233
        %v252 = vpack.c.bf16 %v236, %v235
        %v253 = vpack.c.bf16 %v238, %v237
        %v254 = vpack.c.bf16 %v240, %v239
        %v255 = vpack.c.bf16 %v243, %v241
        %v256 = vpack.c.bf16 %v244, %v242
        %v257 = vpack.c.bf16 %v247, %v245
        %v258 = vpack.c.bf16 %v248, %v246
        %v260 = vlaneseq
        %v261 = vshrl.u32 %v260, 7
        %v262 = vsub.s32 0, %v261
        %v263 = vrot.slane %v249, %v262
        %v264 = vlaneseq
        %v265 = vshrl.u32 %v264, 7
        %v266 = vsub.s32 1, %v265
        %v267 = vrot.slane %v249, %v266
        %vm270 = vcmask 261120
        %v272 = vsel %vm270, %v251, 0
        %v275 = vsel %vm270, %v252, 0
        %v278 = vsel %vm270, %v253, 0
        %v281 = vsel %vm270, %v254, 0
        %283 = vmatprep.subr.bf16.mxu0 %v256
        %284 = vmatpush1.bf16.msra.mxu0 %v255
        %285 = vmatprep.subr.bf16.mxu0 %v258
        %286 = vmatpush1.bf16.msra.mxu0 %v257
        %287 = vmatprep.subr.bf16.mxu0 0
        %288 = vmatpush1.bf16.msra.mxu0 0
        %289 = vmatprep.subr.bf16.mxu0 0
        %290 = vmatpush1.bf16.msra.mxu0 0
        %291 = vmatprep.subr.bf16.mxu0 0
        %292 = vmatpush1.bf16.msra.mxu0 0
        %293 = vmatprep.subr.bf16.mxu0 0
        %294 = vmatpush1.bf16.msra.mxu0 0
        %295 = vmatprep.subr.bf16.mxu0 0
        %296 = vmatpush1.bf16.msra.mxu0 0
        %297 = vmatprep.subr.bf16.mxu0 0
        %298 = vmatpush1.bf16.msra.mxu0 0
        %299 = vmatprep.subr.bf16.mxu0 0
        %300 = vmatpush1.bf16.msra.mxu0 0
        %301 = vmatprep.subr.bf16.mxu0 0
        %302 = vmatpush1.bf16.msra.mxu0 0
        %303 = vmatprep.subr.bf16.mxu0 0
        %304 = vmatpush1.bf16.msra.mxu0 0
        %305 = vmatprep.subr.bf16.mxu0 0
        %306 = vmatpush1.bf16.msra.mxu0 0
        %307 = vmatprep.subr.bf16.mxu0 0
        %308 = vmatpush1.bf16.msra.mxu0 0
        %309 = vmatprep.subr.bf16.mxu0 0
        %310 = vmatpush1.bf16.msra.mxu0 0
        %311 = vmatprep.subr.bf16.mxu0 0
        %312 = vmatpush1.bf16.msra.mxu0 0
        %313 = vmatprep.subr.bf16.mxu0 0
        %314 = vmatpush1.bf16.msra.mxu0 0
        %315 = vmatprep.mubr.bf16.mxu0 0
        %316 = vmatmul.mubr.bf16.gmra.mrb[0].mxu0 %v272
        %v317 = vpop.f32.mrb[0].mxu0
        %v318 = vadd.f32 %v263, %v317
        %v319 = vpop.f32.mrb[0].mxu0
        %v320 = vadd.f32 %v267, %v319
        %v321 = vpop.f32.mrb[0].mxu0
        %v322 = vadd.f32 %v263, %v321
        %v323 = vpop.f32.mrb[0].mxu0
        %v324 = vadd.f32 %v267, %v323
        %325 = vmatprep.mubr.bf16.mxu0 0
        %326 = vmatmul.mubr.bf16.gmra.mrb[0].mxu0 %v275
        %v327 = vpop.f32.mrb[0].mxu0
        %v328 = vadd.f32 %v263, %v327
        %v329 = vpop.f32.mrb[0].mxu0
        %v330 = vadd.f32 %v267, %v329
        %v331 = vpop.f32.mrb[0].mxu0
        %v332 = vadd.f32 %v263, %v331
        %v333 = vpop.f32.mrb[0].mxu0
        %v334 = vadd.f32 %v267, %v333
        %335 = vmatprep.mubr.bf16.mxu0 0
        %336 = vmatmul.mubr.bf16.gmra.mrb[0].mxu0 %v278
        %v337 = vpop.f32.mrb[0].mxu0
        %v338 = vadd.f32 %v263, %v337
        %v339 = vpop.f32.mrb[0].mxu0
        %v340 = vadd.f32 %v267, %v339
        %v341 = vpop.f32.mrb[0].mxu0
        %v342 = vadd.f32 %v263, %v341
        %v343 = vpop.f32.mrb[0].mxu0
        %v344 = vadd.f32 %v267, %v343
        %345 = vmatprep.mubr.bf16.mxu0 0
        %346 = vmatmul.mubr.bf16.gmra.mrb[0].mxu0 %v281
        %v347 = vpop.f32.mrb[0].mxu0
        %v348 = vadd.f32 %v263, %v347
        %v349 = vpop.f32.mrb[0].mxu0
        %v350 = vadd.f32 %v267, %v349
        %v351 = vpop.f32.mrb[0].mxu0
        %v352 = vadd.f32 %v263, %v351
        %v353 = vpop.f32.mrb[0].mxu0
        %v354 = vadd.f32 %v267, %v353
        %355 = vdwg.mxu0
        %v356 = vpack.c.bf16 %v322, %v318
        %v357 = vpack.c.bf16 %v324, %v320
        %v358 = vpack.c.bf16 %v332, %v328
        %v359 = vpack.c.bf16 %v334, %v330
        %v360 = vpack.c.bf16 %v342, %v338
        %v361 = vpack.c.bf16 %v344, %v340
        %v362 = vpack.c.bf16 %v352, %v348
        %v363 = vpack.c.bf16 %v354, %v350
        %v364 = vtanh.bf16.pop %v356
        %v365 = vtanh.bf16.pop %v357
        %v366 = vtanh.bf16.pop %v358
        %v367 = vtanh.bf16.pop %v359
        %v368 = vtanh.bf16.pop %v360
        %v369 = vtanh.bf16.pop %v361
        %v370 = vtanh.bf16.pop %v362
        %v371 = vtanh.bf16.pop %v363
        %v372 = vunpack.c.l.bf16 %v364
        %v373 = vunpack.c.l.bf16 %v365
        %v374 = vunpack.c.h.bf16 %v364
        %v375 = vunpack.c.h.bf16 %v365
        %v376 = vunpack.c.l.bf16 %v366
        %v377 = vunpack.c.l.bf16 %v367
        %v378 = vunpack.c.h.bf16 %v366
        %v379 = vunpack.c.h.bf16 %v367
        %v380 = vunpack.c.l.bf16 %v368
        %v381 = vunpack.c.l.bf16 %v369
        %v382 = vunpack.c.h.bf16 %v368
        %v383 = vunpack.c.h.bf16 %v369
        %v384 = vunpack.c.l.bf16 %v370
        %v385 = vunpack.c.l.bf16 %v371
        %v386 = vunpack.c.h.bf16 %v370
        %v387 = vunpack.c.h.bf16 %v371
        %v389 = vlaneseq
        %v390 = vshrl.u32 %v389, 7
        %v391 = vsub.s32 0, %v390
        %v392 = vrot.slane %v250, %v391
        %v393 = vlaneseq
        %v394 = vshrl.u32 %v393, 7
        %v395 = vsub.s32 1, %v394
        %v396 = vrot.slane %v250, %v395
        %v399 = vmul.f32 %v372, %v392
        %v400 = vmul.f32 %v373, %v396
        %v401 = vmul.f32 %v374, %v392
        %v402 = vmul.f32 %v375, %v396
        %v403 = vmul.f32 %v376, %v392
        %v404 = vmul.f32 %v377, %v396
        %v405 = vmul.f32 %v378, %v392
        %v406 = vmul.f32 %v379, %v396
        %v407 = vmul.f32 %v380, %v392
        %v408 = vmul.f32 %v381, %v396
        %v409 = vmul.f32 %v382, %v392
        %v410 = vmul.f32 %v383, %v396
        %v411 = vmul.f32 %v384, %v392
        %v412 = vmul.f32 %v385, %v396
        %v413 = vmul.f32 %v386, %v392
        %v414 = vmul.f32 %v387, %v396
        %v415 = vadd.f32 %v399, %v400
        %416 = vadd.xlane.f32.xlu0 %v415
        %v417 = vpop.xlane.xlu0 %416
        %v418 = vadd.f32 %v401, %v402
        %419 = vadd.xlane.f32.xlu0 %v418
        %v420 = vpop.xlane.xlu0 %419
        %v421 = vadd.f32 %v403, %v404
        %422 = vadd.xlane.f32.xlu0 %v421
        %v423 = vpop.xlane.xlu0 %422
        %v424 = vadd.f32 %v405, %v406
        %425 = vadd.xlane.f32.xlu0 %v424
        %v426 = vpop.xlane.xlu0 %425
        %v427 = vadd.f32 %v407, %v408
        %428 = vadd.xlane.f32.xlu0 %v427
        %v429 = vpop.xlane.xlu0 %428
        %v430 = vadd.f32 %v409, %v410
        %431 = vadd.xlane.f32.xlu0 %v430
        %v432 = vpop.xlane.xlu0 %431
        %v433 = vadd.f32 %v411, %v412
        %434 = vadd.xlane.f32.xlu0 %v433
        %v435 = vpop.xlane.xlu0 %434
        %v436 = vadd.f32 %v413, %v414
        %437 = vadd.xlane.f32.xlu0 %v436
        %v438 = vpop.xlane.xlu0 %437
        %v439 = vrot.slane %v417, 4
        %v440 = vmax.f32 %v417, %v439
        %v441 = vrot.slane %v440, 2
        %v442 = vmax.f32 %v440, %v441
        %v443 = vrot.slane %v442, 1
        %v444 = vmax.f32 %v442, %v443
        %v445 = vrot.slane %v420, 4
        %v446 = vmax.f32 %v420, %v445
        %v447 = vrot.slane %v446, 2
        %v448 = vmax.f32 %v446, %v447
        %v449 = vrot.slane %v448, 1
        %v450 = vmax.f32 %v448, %v449
        %v451 = vrot.slane %v423, 4
        %v452 = vmax.f32 %v423, %v451
        %v453 = vrot.slane %v452, 2
        %v454 = vmax.f32 %v452, %v453
        %v455 = vrot.slane %v454, 1
        %v456 = vmax.f32 %v454, %v455
        %v457 = vrot.slane %v426, 4
        %v458 = vmax.f32 %v426, %v457
        %v459 = vrot.slane %v458, 2
        %v460 = vmax.f32 %v458, %v459
        %v461 = vrot.slane %v460, 1
        %v462 = vmax.f32 %v460, %v461
        %v463 = vrot.slane %v429, 4
        %v464 = vmax.f32 %v429, %v463
        %v465 = vrot.slane %v464, 2
        %v466 = vmax.f32 %v464, %v465
        %v467 = vrot.slane %v466, 1
        %v468 = vmax.f32 %v466, %v467
        %v469 = vrot.slane %v432, 4
        %v470 = vmax.f32 %v432, %v469
        %v471 = vrot.slane %v470, 2
        %v472 = vmax.f32 %v470, %v471
        %v473 = vrot.slane %v472, 1
        %v474 = vmax.f32 %v472, %v473
        %v475 = vrot.slane %v435, 4
        %v476 = vmax.f32 %v435, %v475
        %v477 = vrot.slane %v476, 2
        %v478 = vmax.f32 %v476, %v477
        %v479 = vrot.slane %v478, 1
        %v480 = vmax.f32 %v478, %v479
        %v481 = vrot.slane %v438, 4
        %v482 = vmax.f32 %v438, %v481
        %v483 = vrot.slane %v482, 2
        %v484 = vmax.f32 %v482, %v483
        %v485 = vrot.slane %v484, 1
        %v486 = vmax.f32 %v484, %v485
        %v487 = vsub.f32 %v417, %v444
        %v488 = vsub.f32 %v420, %v450
        %v489 = vsub.f32 %v423, %v456
        %v490 = vsub.f32 %v426, %v462
        %v491 = vsub.f32 %v429, %v468
        %v492 = vsub.f32 %v432, %v474
        %v493 = vsub.f32 %v435, %v480
        %v494 = vsub.f32 %v438, %v486
        %v495 = vmul.f32 %v487, 1.442695
        %v496 = vpow.pop %v495
        %v497 = vmul.f32 %v488, 1.442695
        %v498 = vpow.pop %v497
        %v499 = vmul.f32 %v489, 1.442695
        %v500 = vpow.pop %v499
        %v501 = vmul.f32 %v490, 1.442695
        %v502 = vpow.pop %v501
        %v503 = vmul.f32 %v491, 1.442695
        %v504 = vpow.pop %v503
        %v505 = vmul.f32 %v492, 1.442695
        %v506 = vpow.pop %v505
        %v507 = vmul.f32 %v493, 1.442695
        %v508 = vpow.pop %v507
        %v509 = vmul.f32 %v494, 1.442695
        %v510 = vpow.pop %v509
        %v511 = vrot.slane %v496, 4
        %v512 = vadd.f32 %v496, %v511
        %v513 = vrot.slane %v512, 2
        %v514 = vadd.f32 %v512, %v513
        %v515 = vrot.slane %v514, 1
        %v516 = vadd.f32 %v514, %v515
        %v517 = vrot.slane %v498, 4
        %v518 = vadd.f32 %v498, %v517
        %v519 = vrot.slane %v518, 2
        %v520 = vadd.f32 %v518, %v519
        %v521 = vrot.slane %v520, 1
        %v522 = vadd.f32 %v520, %v521
        %v523 = vrot.slane %v500, 4
        %v524 = vadd.f32 %v500, %v523
        %v525 = vrot.slane %v524, 2
        %v526 = vadd.f32 %v524, %v525
        %v527 = vrot.slane %v526, 1
        %v528 = vadd.f32 %v526, %v527
        %v529 = vrot.slane %v502, 4
        %v530 = vadd.f32 %v502, %v529
        %v531 = vrot.slane %v530, 2
        %v532 = vadd.f32 %v530, %v531
        %v533 = vrot.slane %v532, 1
        %v534 = vadd.f32 %v532, %v533
        %v535 = vrot.slane %v504, 4
        %v536 = vadd.f32 %v504, %v535
        %v537 = vrot.slane %v536, 2
        %v538 = vadd.f32 %v536, %v537
        %v539 = vrot.slane %v538, 1
        %v540 = vadd.f32 %v538, %v539
        %v541 = vrot.slane %v506, 4
        %v542 = vadd.f32 %v506, %v541
        %v543 = vrot.slane %v542, 2
        %v544 = vadd.f32 %v542, %v543
        %v545 = vrot.slane %v544, 1
        %v546 = vadd.f32 %v544, %v545
        %v547 = vrot.slane %v508, 4
        %v548 = vadd.f32 %v508, %v547
        %v549 = vrot.slane %v548, 2
        %v550 = vadd.f32 %v548, %v549
        %v551 = vrot.slane %v550, 1
        %v552 = vadd.f32 %v550, %v551
        %v553 = vrot.slane %v510, 4
        %v554 = vadd.f32 %v510, %v553
        %v555 = vrot.slane %v554, 2
        %v556 = vadd.f32 %v554, %v555
        %v557 = vrot.slane %v556, 1
        %v558 = vadd.f32 %v556, %v557
        %v559 = vmul.f32 %v233, %v496
        %v560 = vmul.f32 %v234, %v498
        %v561 = vmul.f32 %v235, %v500
        %v562 = vmul.f32 %v236, %v502
        %v563 = vmul.f32 %v237, %v504
        %v564 = vmul.f32 %v238, %v506
        %v565 = vmul.f32 %v239, %v508
        %v566 = vmul.f32 %v240, %v510
        %v567 = vsel %vm270, %v559, 0.0
        %v568 = vrot.slane %v567, 4
        %v569 = vadd.f32 %v567, %v568
        %v570 = vrot.slane %v569, 2
        %v571 = vadd.f32 %v569, %v570
        %v572 = vrot.slane %v571, 1
        %v573 = vadd.f32 %v571, %v572
        %v574 = vsel %vm270, %v560, 0.0
        %v575 = vrot.slane %v574, 4
        %v576 = vadd.f32 %v574, %v575
        %v577 = vrot.slane %v576, 2
        %v578 = vadd.f32 %v576, %v577
        %v579 = vrot.slane %v578, 1
        %v580 = vadd.f32 %v578, %v579
        %v581 = vsel %vm270, %v561, 0.0
        %v582 = vrot.slane %v581, 4
        %v583 = vadd.f32 %v581, %v582
        %v584 = vrot.slane %v583, 2
        %v585 = vadd.f32 %v583, %v584
        %v586 = vrot.slane %v585, 1
        %v587 = vadd.f32 %v585, %v586
        %v588 = vsel %vm270, %v562, 0.0
        %v589 = vrot.slane %v588, 4
        %v590 = vadd.f32 %v588, %v589
        %v591 = vrot.slane %v590, 2
        %v592 = vadd.f32 %v590, %v591
        %v593 = vrot.slane %v592, 1
        %v594 = vadd.f32 %v592, %v593
        %v595 = vsel %vm270, %v563, 0.0
        %v596 = vrot.slane %v595, 4
        %v597 = vadd.f32 %v595, %v596
        %v598 = vrot.slane %v597, 2
        %v599 = vadd.f32 %v597, %v598
        %v600 = vrot.slane %v599, 1
        %v601 = vadd.f32 %v599, %v600
        %v602 = vsel %vm270, %v564, 0.0
        %v603 = vrot.slane %v602, 4
        %v604 = vadd.f32 %v602, %v603
        %v605 = vrot.slane %v604, 2
        %v606 = vadd.f32 %v604, %v605
        %v607 = vrot.slane %v606, 1
        %v608 = vadd.f32 %v606, %v607
        %v609 = vsel %vm270, %v565, 0.0
        %v610 = vrot.slane %v609, 4
        %v611 = vadd.f32 %v609, %v610
        %v612 = vrot.slane %v611, 2
        %v613 = vadd.f32 %v611, %v612
        %v614 = vrot.slane %v613, 1
        %v615 = vadd.f32 %v613, %v614
        %v616 = vsel %vm270, %v566, 0.0
        %v617 = vrot.slane %v616, 4
        %v618 = vadd.f32 %v616, %v617
        %v619 = vrot.slane %v618, 2
        %v620 = vadd.f32 %v618, %v619
        %v621 = vrot.slane %v620, 1
        %v622 = vadd.f32 %v620, %v621
        %v623 = vrcp.pop %v516
        %v624 = vrcp.pop %v522
        %v625 = vrcp.pop %v528
        %v626 = vrcp.pop %v534
        %v627 = vrcp.pop %v540
        %v628 = vrcp.pop %v546
        %v629 = vrcp.pop %v552
        %v630 = vrcp.pop %v558
        %v631 = vmul.f32 %v573, %v623
        %v632 = vmul.f32 %v580, %v624
        %v633 = vmul.f32 %v587, %v625
        %v634 = vmul.f32 %v594, %v626
        %v635 = vmul.f32 %v601, %v627
        %v636 = vmul.f32 %v608, %v628
        %v637 = vmul.f32 %v615, %v629
        %v638 = vmul.f32 %v622, %v630
        %vm647 = vcmask 1041409
        %v648 = vsel %vm647, %v632, %v631
        %vm649 = vcmask 1042434
        %v650 = vsel %vm649, %v633, %v648
        %vm651 = vcmask 1043459
        %v652 = vsel %vm651, %v634, %v650
        %vm653 = vcmask 1044484
        %v654 = vsel %vm653, %v635, %v652
        %vm655 = vcmask 1045509
        %v656 = vsel %vm655, %v636, %v654
        %vm657 = vcmask 1046534
        %v658 = vsel %vm657, %v637, %v656
        %vm659 = vcmask 1047559
        %v660 = vsel %vm659, %v638, %v658
        %662 = vst.msk [vmem:[%s230] sm:$0xff] %vm270, %v660
        %s663 = sand.u32 %s119, 1
        %s664 = scalar_lea.sflag [#allocation4], %s663
        %s665 = sand.u32 %s119, 1
        %s666 = smul.addr %s665, 8
        %s667 = scalar_lea.vmem [#allocation7], %s666
        // Predicated region
        $region45: #{tpu_custom_call.1} parent=35 // pred_check
          %p668 = pneg %p129
        $region46: #{tpu_custom_call.1} parent=35 // pred_check_branch
          %670 = sbr.rel (%p668) target = $region48
        $region47: #{tpu_custom_call.1} parent=35 // pred_region
          %s672 = ssub.s32 128, 128
          %673 = vsyncadd %s664, %s672
          %s674 = smul.addr %s22, 128
          %s675 = scalar_lea.hbm %s4, %s674
          %s677 = sshll.u32 %s667, 4
          %s678 = int_to_ptr.vmem [resolvable:$true] %s677
          %680 = dma.vmem_to_hbm [thread:$0]  %s678, 128, %s675, %s664
        $region48: #{tpu_custom_call.1} parent=35 // pred_fallthru
          _
      $region36: #{tpu_custom_call.1} parent=5 // pred_fallthru
        _
      %p681 = scmp.le.s32.totalorder 2, %s17
      // Predicated region
      $region49: #{tpu_custom_call.1} parent=5 // pred_check
        %p682 = pneg %p681
      $region50: #{tpu_custom_call.1} parent=5 // pred_check_branch
        %684 = sbr.rel (%p682) target = $region52
      $region51: #{tpu_custom_call.1} parent=5 // pred_region
        %s685 = ssub.s32 %s17, 2
        // Predicated region
        $region53: #{tpu_custom_call.1} parent=51 // pred_check
          %p686 = pneg %p135
        $region54: #{tpu_custom_call.1} parent=51 // pred_check_branch
          %688 = sbr.rel (%p686) target = $region56
        $region55: #{tpu_custom_call.1} parent=51 // pred_region
          %s689 = sand.u32 %s120, 1
          %s690 = scalar_lea.sflag [#allocation4], %s689
          %s691 = sand.u32 %s120, 1
          %s692 = smul.addr %s691, 8
          %s693 = scalar_lea.vmem [#allocation7], %s692
          %694 = dma.done %s690, 128
        $region56: #{tpu_custom_call.1} parent=51 // pred_fallthru
          _
      $region52: #{tpu_custom_call.1} parent=5 // pred_fallthru
        _
    $region6: #{tpu_custom_call.1} parent=1 // loop_footer
      %s21 = sadd.s32 1, %s17
    $region7: #{tpu_custom_call.1} parent=1 // loop_footer_branch
      %16 = sbr.rel target = $region3
    $region8: #{tpu_custom_call.1} parent=1 // loop_exit
      _
    %695 = vsyncpa [#allocation3], 1
    %s696 = scalar_lea.sflag [#allocation3], 1
    %697 = vsyncpa %s696, 1
    %698 = vsyncpa [#allocation6], 1
    %699 = vsyncpa [#allocation4], 1
    %s700 = scalar_lea.sflag [#allocation4], 1
    %701 = vsyncpa %s700, 1

</llo_original>
